<compile_context>
chip_gen: v7x
topology: tpu7x:2x2x1
jax: 0.10.0
libtpu: 0.0.40
codegen_flags: <defaults>
</compile_context>

<pallas_src>
import jax
import jax.numpy as jnp
from jax import lax
from jax.experimental import pallas as pl
from jax.experimental.pallas import tpu as pltpu

# ---- static model configuration (small, deterministic) ----
BATCH = 8
INPUT_DIM = 32
HIDDEN = 128
OUT = 10
TIME_STEPS = 8
BETA = 0.9
THRESHOLD = 1.0

# Contract the last dim of both operands: A @ B.T without an explicit transpose op.
_DOT_NT = (((1,), (1,)), ((), ()))


def snn_kernel(x_ref, w1_ref, b1_ref, w2_ref, b2_ref, out_ref, spk1_buf):
    """Whole SNN forward (all time steps) in one kernel invocation.

    x_ref    : (B, D)   f32   input data (constant across time steps)
    w1_ref   : (128, D) f32   Linear-1 weight (PyTorch layout, used transposed)
    b1_ref   : (1, 128) f32   Linear-1 bias
    w2_ref   : (10,128) bf16  Linear-2 weight (PyTorch layout, used transposed)
    b2_ref   : (1, 10)  f32   Linear-2 bias
    out_ref  : (T, B, 10) f32 recorded output spikes
    spk1_buf : (T*B, 128) f32 VMEM scratch holding all layer-1 spikes
    """
    x = x_ref[...]
    B = x.shape[0]

    # Layer-1 input current is time-invariant -> one small MXU matmul.
    cur1 = lax.dot_general(x, w1_ref[...], _DOT_NT,
                           preferred_element_type=jnp.float32) + b1_ref[...]

    # ---- Layer-1 Leaky recurrence (VPU only), fully unrolled over T ----
    mem1 = jnp.zeros((B, HIDDEN), jnp.float32)
    spk1 = jnp.zeros((B, HIDDEN), jnp.float32)       # reset_t == spk_{t-1}
    for t in range(TIME_STEPS):
        mem1 = BETA * mem1 + cur1 - spk1 * THRESHOLD
        spk1 = (mem1 > THRESHOLD).astype(jnp.float32)
        spk1_buf[pl.ds(t * B, B), :] = spk1          # full (8,128) tile store

    # ---- Single time-batched MXU GEMM: (T*B,128)bf16 x (10,128)bf16^T -> f32 ----
    spk1_all = spk1_buf[...].astype(jnp.bfloat16)    # spikes are 0/1: lossless
    cur2_all = lax.dot_general(spk1_all, w2_ref[...], _DOT_NT,
                               preferred_element_type=jnp.float32) + b2_ref[...]

    # ---- Layer-2 Leaky recurrence (tiny, VPU only), fully unrolled ----
    mem2 = jnp.zeros((B, OUT), jnp.float32)
    spk2 = jnp.zeros((B, OUT), jnp.float32)
    for t in range(TIME_STEPS):
        cur2 = cur2_all[t * B:(t + 1) * B, :]
        mem2 = BETA * mem2 + cur2 - spk2 * THRESHOLD
        spk2 = (mem2 > THRESHOLD).astype(jnp.float32)
        out_ref[t] = spk2                            # one masked vst per step


def prepare_params(w1, b1, w2, b2):
    """One-time parameter prep. Runs ONCE at setup — NOT in the per-call hot path."""
    return (
        w1.astype(jnp.float32),                 # (128, D)  used transposed in-kernel
        b1.reshape(1, HIDDEN).astype(jnp.float32),
        w2.astype(jnp.bfloat16),                # (10, 128) bf16 for single-pass MXU
        b2.reshape(1, OUT).astype(jnp.float32),
    )


@jax.jit
def snn_forward(data, w1, b1_2d, w2_bf16, b2_2d):
    """data: (B, D) f32; weights already prepared by prepare_params().

    The jitted hot path is exactly one pallas_call — no transpose/pad/slice glue.
    """
    B = data.shape[0]
    vmem = pl.BlockSpec(memory_space=pltpu.MemorySpace.VMEM)
    return pl.pallas_call(
        snn_kernel,
        out_shape=jax.ShapeDtypeStruct((TIME_STEPS, B, OUT), jnp.float32),
        in_specs=[vmem, vmem, vmem, vmem, vmem],
        out_specs=vmem,
        scratch_shapes=[pltpu.VMEM((TIME_STEPS * B, HIDDEN), jnp.float32)],
    )(data, w1, b1_2d, w2_bf16, b2_2d)


def snn_reference(data, w1, b1, w2, b2):
    """Pure-JAX reference mirroring snntorch Leaky semantics."""
    B = data.shape[0]
    cur1 = data @ w1.T + b1
    mem1 = jnp.zeros((B, HIDDEN), jnp.float32)
    mem2 = jnp.zeros((B, OUT), jnp.float32)
    spks = []
    for _ in range(TIME_STEPS):
        reset1 = (mem1 > THRESHOLD).astype(jnp.float32)
        mem1 = BETA * mem1 + cur1 - reset1 * THRESHOLD
        spk1 = (mem1 > THRESHOLD).astype(jnp.float32)
        cur2 = spk1 @ w2.T + b2
        reset2 = (mem2 > THRESHOLD).astype(jnp.float32)
        mem2 = BETA * mem2 + cur2 - reset2 * THRESHOLD
        spk2 = (mem2 > THRESHOLD).astype(jnp.float32)
        spks.append(spk2)
    return jnp.stack(spks)


if __name__ == "__main__":
    key = jax.random.PRNGKey(0)
    k_x, k_w1, k_b1, k_w2, k_b2 = jax.random.split(key, 5)

    data = jax.random.normal(k_x, (BATCH, INPUT_DIM), dtype=jnp.float32)
    # Deterministic "Kaiming-uniform-ish" init (scaled normals) for the two Linears.
    w1 = jax.random.normal(k_w1, (HIDDEN, INPUT_DIM), dtype=jnp.float32) * (1.0 / INPUT_DIM**0.5)
    b1 = jax.random.normal(k_b1, (HIDDEN,), dtype=jnp.float32) * 0.1
    w2 = jax.random.normal(k_w2, (OUT, HIDDEN), dtype=jnp.float32) * (1.0 / HIDDEN**0.5)
    b2 = jax.random.normal(k_b2, (OUT,), dtype=jnp.float32) * 0.1

    # One-time prep (outside the hot path).
    w1_p, b1_p, w2_p, b2_p = prepare_params(w1, b1, w2, b2)

    out = snn_forward(data, w1_p, b1_p, w2_p, b2_p)
    out = jax.block_until_ready(out)

    # Reference uses the same bf16-rounded w2 the kernel consumes (spikes are exact
    # 0/1, so the layer-2 products are identical; only w2 rounding could differ).
    w2_rounded = w2.astype(jnp.bfloat16).astype(jnp.float32)
    ref = snn_reference(data, w1, b1, w2_rounded, b2)

    assert out.shape == (TIME_STEPS, BATCH, OUT), out.shape
    # Spikes are binary; allclose is effectively an exact-match check for this seed.
    assert jnp.allclose(out, ref), "Pallas SNN output mismatch vs JAX reference"

    print("KERNEL_OK")
</pallas_src>

<mosaic_0001>
module attributes {stable_mosaic.version = 11 : i64} {
  func.func @snn_kernel(%arg0: memref<8x32xf32, #tpu.memory_space<vmem>>, %arg1: memref<128x32xf32, #tpu.memory_space<vmem>>, %arg2: memref<1x128xf32, #tpu.memory_space<vmem>>, %arg3: memref<10x128xbf16, #tpu.memory_space<vmem>>, %arg4: memref<1x10xf32, #tpu.memory_space<vmem>>, %arg5: memref<8x8x10xf32, #tpu.memory_space<vmem>>, %arg6: memref<64x128xf32, #tpu.memory_space<vmem>>) attributes {dimension_semantics = [], scalar_prefetch = 0 : i64, scratch_operands = 1 : i64, tpu.core_type = #tpu.core_type<tc>} {
    %c0 = arith.constant 0 : index
    %c0_0 = arith.constant 0 : index
    %0 = vector.load %arg0[%c0, %c0_0] : memref<8x32xf32, #tpu.memory_space<vmem>>, vector<8x32xf32>
    %c0_1 = arith.constant 0 : index
    %c0_2 = arith.constant 0 : index
    %1 = vector.load %arg1[%c0_1, %c0_2] : memref<128x32xf32, #tpu.memory_space<vmem>>, vector<128x32xf32>
    %cst = arith.constant dense<0.000000e+00> : vector<8x128xf32>
    %2 = tpu.matmul %0, %1, %cst {dimension_numbers = #tpu.dot_dimension_numbers<[1], [1], [0], [0], [0, 0, 1, 0], [], []>} : vector<8x32xf32>, vector<128x32xf32>, vector<8x128xf32> -> vector<8x128xf32>
    %c0_3 = arith.constant 0 : index
    %c0_4 = arith.constant 0 : index
    %3 = vector.load %arg2[%c0_3, %c0_4] : memref<1x128xf32, #tpu.memory_space<vmem>>, vector<1x128xf32>
    %4 = vector.broadcast %3 : vector<1x128xf32> to vector<8x128xf32>
    %5 = arith.addf %2, %4 : vector<8x128xf32>
    %cst_5 = arith.constant 0.000000e+00 : f32
    %6 = vector.broadcast %cst_5 : f32 to vector<8x128xf32>
    %cst_6 = arith.constant 0.000000e+00 : f32
    %7 = vector.broadcast %cst_6 : f32 to vector<8x128xf32>
    %cst_7 = arith.constant 0.899999976 : f32
    %8 = vector.broadcast %cst_7 : f32 to vector<8x128xf32>
    %9 = arith.mulf %8, %6 : vector<8x128xf32>
    %10 = arith.addf %9, %5 : vector<8x128xf32>
    %cst_8 = arith.constant 1.000000e+00 : f32
    %11 = vector.broadcast %cst_8 : f32 to vector<8x128xf32>
    %12 = arith.mulf %7, %11 : vector<8x128xf32>
    %13 = arith.subf %10, %12 : vector<8x128xf32>
    %cst_9 = arith.constant 1.000000e+00 : f32
    %14 = vector.broadcast %cst_9 : f32 to vector<8x128xf32>
    %15 = arith.cmpf ogt, %13, %14 : vector<8x128xf32>
    %16 = arith.extui %15 : vector<8x128xi1> to vector<8x128xi32>
    %17 = arith.sitofp %16 : vector<8x128xi32> to vector<8x128xf32>
    %c0_10 = arith.constant 0 : index
    %c0_11 = arith.constant 0 : index
    %18 = vector.load %arg6[%c0_10, %c0_11] : memref<64x128xf32, #tpu.memory_space<vmem>>, vector<8x128xf32>
    tpu.vector_store %arg6[%c0_10, %c0_11], %17 {strides = array<i32>} : memref<64x128xf32, #tpu.memory_space<vmem>>, vector<8x128xf32>,
    %cst_12 = arith.constant 0.899999976 : f32
    %19 = vector.broadcast %cst_12 : f32 to vector<8x128xf32>
    %20 = arith.mulf %19, %13 : vector<8x128xf32>
    %21 = arith.addf %20, %5 : vector<8x128xf32>
    %cst_13 = arith.constant 1.000000e+00 : f32
    %22 = vector.broadcast %cst_13 : f32 to vector<8x128xf32>
    %23 = arith.mulf %17, %22 : vector<8x128xf32>
    %24 = arith.subf %21, %23 : vector<8x128xf32>
    %cst_14 = arith.constant 1.000000e+00 : f32
    %25 = vector.broadcast %cst_14 : f32 to vector<8x128xf32>
    %26 = arith.cmpf ogt, %24, %25 : vector<8x128xf32>
    %27 = arith.extui %26 : vector<8x128xi1> to vector<8x128xi32>
    %28 = arith.sitofp %27 : vector<8x128xi32> to vector<8x128xf32>
    %c8 = arith.constant 8 : index
    %c0_15 = arith.constant 0 : index
    %29 = vector.load %arg6[%c8, %c0_15] : memref<64x128xf32, #tpu.memory_space<vmem>>, vector<8x128xf32>
    tpu.vector_store %arg6[%c8, %c0_15], %28 {strides = array<i32>} : memref<64x128xf32, #tpu.memory_space<vmem>>, vector<8x128xf32>,
    %cst_16 = arith.constant 0.899999976 : f32
    %30 = vector.broadcast %cst_16 : f32 to vector<8x128xf32>
    %31 = arith.mulf %30, %24 : vector<8x128xf32>
    %32 = arith.addf %31, %5 : vector<8x128xf32>
    %cst_17 = arith.constant 1.000000e+00 : f32
    %33 = vector.broadcast %cst_17 : f32 to vector<8x128xf32>
    %34 = arith.mulf %28, %33 : vector<8x128xf32>
    %35 = arith.subf %32, %34 : vector<8x128xf32>
    %cst_18 = arith.constant 1.000000e+00 : f32
    %36 = vector.broadcast %cst_18 : f32 to vector<8x128xf32>
    %37 = arith.cmpf ogt, %35, %36 : vector<8x128xf32>
    %38 = arith.extui %37 : vector<8x128xi1> to vector<8x128xi32>
    %39 = arith.sitofp %38 : vector<8x128xi32> to vector<8x128xf32>
    %c16 = arith.constant 16 : index
    %c0_19 = arith.constant 0 : index
    %40 = vector.load %arg6[%c16, %c0_19] : memref<64x128xf32, #tpu.memory_space<vmem>>, vector<8x128xf32>
    tpu.vector_store %arg6[%c16, %c0_19], %39 {strides = array<i32>} : memref<64x128xf32, #tpu.memory_space<vmem>>, vector<8x128xf32>,
    %cst_20 = arith.constant 0.899999976 : f32
    %41 = vector.broadcast %cst_20 : f32 to vector<8x128xf32>
    %42 = arith.mulf %41, %35 : vector<8x128xf32>
    %43 = arith.addf %42, %5 : vector<8x128xf32>
    %cst_21 = arith.constant 1.000000e+00 : f32
    %44 = vector.broadcast %cst_21 : f32 to vector<8x128xf32>
    %45 = arith.mulf %39, %44 : vector<8x128xf32>
    %46 = arith.subf %43, %45 : vector<8x128xf32>
    %cst_22 = arith.constant 1.000000e+00 : f32
    %47 = vector.broadcast %cst_22 : f32 to vector<8x128xf32>
    %48 = arith.cmpf ogt, %46, %47 : vector<8x128xf32>
    %49 = arith.extui %48 : vector<8x128xi1> to vector<8x128xi32>
    %50 = arith.sitofp %49 : vector<8x128xi32> to vector<8x128xf32>
    %c24 = arith.constant 24 : index
    %c0_23 = arith.constant 0 : index
    %51 = vector.load %arg6[%c24, %c0_23] : memref<64x128xf32, #tpu.memory_space<vmem>>, vector<8x128xf32>
    tpu.vector_store %arg6[%c24, %c0_23], %50 {strides = array<i32>} : memref<64x128xf32, #tpu.memory_space<vmem>>, vector<8x128xf32>,
    %cst_24 = arith.constant 0.899999976 : f32
    %52 = vector.broadcast %cst_24 : f32 to vector<8x128xf32>
    %53 = arith.mulf %52, %46 : vector<8x128xf32>
    %54 = arith.addf %53, %5 : vector<8x128xf32>
    %cst_25 = arith.constant 1.000000e+00 : f32
    %55 = vector.broadcast %cst_25 : f32 to vector<8x128xf32>
    %56 = arith.mulf %50, %55 : vector<8x128xf32>
    %57 = arith.subf %54, %56 : vector<8x128xf32>
    %cst_26 = arith.constant 1.000000e+00 : f32
    %58 = vector.broadcast %cst_26 : f32 to vector<8x128xf32>
    %59 = arith.cmpf ogt, %57, %58 : vector<8x128xf32>
    %60 = arith.extui %59 : vector<8x128xi1> to vector<8x128xi32>
    %61 = arith.sitofp %60 : vector<8x128xi32> to vector<8x128xf32>
    %c32 = arith.constant 32 : index
    %c0_27 = arith.constant 0 : index
    %62 = vector.load %arg6[%c32, %c0_27] : memref<64x128xf32, #tpu.memory_space<vmem>>, vector<8x128xf32>
    tpu.vector_store %arg6[%c32, %c0_27], %61 {strides = array<i32>} : memref<64x128xf32, #tpu.memory_space<vmem>>, vector<8x128xf32>,
    %cst_28 = arith.constant 0.899999976 : f32
    %63 = vector.broadcast %cst_28 : f32 to vector<8x128xf32>
    %64 = arith.mulf %63, %57 : vector<8x128xf32>
    %65 = arith.addf %64, %5 : vector<8x128xf32>
    %cst_29 = arith.constant 1.000000e+00 : f32
    %66 = vector.broadcast %cst_29 : f32 to vector<8x128xf32>
    %67 = arith.mulf %61, %66 : vector<8x128xf32>
    %68 = arith.subf %65, %67 : vector<8x128xf32>
    %cst_30 = arith.constant 1.000000e+00 : f32
    %69 = vector.broadcast %cst_30 : f32 to vector<8x128xf32>
    %70 = arith.cmpf ogt, %68, %69 : vector<8x128xf32>
    %71 = arith.extui %70 : vector<8x128xi1> to vector<8x128xi32>
    %72 = arith.sitofp %71 : vector<8x128xi32> to vector<8x128xf32>
    %c40 = arith.constant 40 : index
    %c0_31 = arith.constant 0 : index
    %73 = vector.load %arg6[%c40, %c0_31] : memref<64x128xf32, #tpu.memory_space<vmem>>, vector<8x128xf32>
    tpu.vector_store %arg6[%c40, %c0_31], %72 {strides = array<i32>} : memref<64x128xf32, #tpu.memory_space<vmem>>, vector<8x128xf32>,
    %cst_32 = arith.constant 0.899999976 : f32
    %74 = vector.broadcast %cst_32 : f32 to vector<8x128xf32>
    %75 = arith.mulf %74, %68 : vector<8x128xf32>
    %76 = arith.addf %75, %5 : vector<8x128xf32>
    %cst_33 = arith.constant 1.000000e+00 : f32
    %77 = vector.broadcast %cst_33 : f32 to vector<8x128xf32>
    %78 = arith.mulf %72, %77 : vector<8x128xf32>
    %79 = arith.subf %76, %78 : vector<8x128xf32>
    %cst_34 = arith.constant 1.000000e+00 : f32
    %80 = vector.broadcast %cst_34 : f32 to vector<8x128xf32>
    %81 = arith.cmpf ogt, %79, %80 : vector<8x128xf32>
    %82 = arith.extui %81 : vector<8x128xi1> to vector<8x128xi32>
    %83 = arith.sitofp %82 : vector<8x128xi32> to vector<8x128xf32>
    %c48 = arith.constant 48 : index
    %c0_35 = arith.constant 0 : index
    %84 = vector.load %arg6[%c48, %c0_35] : memref<64x128xf32, #tpu.memory_space<vmem>>, vector<8x128xf32>
    tpu.vector_store %arg6[%c48, %c0_35], %83 {strides = array<i32>} : memref<64x128xf32, #tpu.memory_space<vmem>>, vector<8x128xf32>,
    %cst_36 = arith.constant 0.899999976 : f32
    %85 = vector.broadcast %cst_36 : f32 to vector<8x128xf32>
    %86 = arith.mulf %85, %79 : vector<8x128xf32>
    %87 = arith.addf %86, %5 : vector<8x128xf32>
    %cst_37 = arith.constant 1.000000e+00 : f32
    %88 = vector.broadcast %cst_37 : f32 to vector<8x128xf32>
    %89 = arith.mulf %83, %88 : vector<8x128xf32>
    %90 = arith.subf %87, %89 : vector<8x128xf32>
    %cst_38 = arith.constant 1.000000e+00 : f32
    %91 = vector.broadcast %cst_38 : f32 to vector<8x128xf32>
    %92 = arith.cmpf ogt, %90, %91 : vector<8x128xf32>
    %93 = arith.extui %92 : vector<8x128xi1> to vector<8x128xi32>
    %94 = arith.sitofp %93 : vector<8x128xi32> to vector<8x128xf32>
    %c56 = arith.constant 56 : index
    %c0_39 = arith.constant 0 : index
    %95 = vector.load %arg6[%c56, %c0_39] : memref<64x128xf32, #tpu.memory_space<vmem>>, vector<8x128xf32>
    tpu.vector_store %arg6[%c56, %c0_39], %94 {strides = array<i32>} : memref<64x128xf32, #tpu.memory_space<vmem>>, vector<8x128xf32>,
    %c0_40 = arith.constant 0 : index
    %c0_41 = arith.constant 0 : index
    %96 = vector.load %arg6[%c0_40, %c0_41] : memref<64x128xf32, #tpu.memory_space<vmem>>, vector<64x128xf32>
    %97 = arith.truncf %96 : vector<64x128xf32> to vector<64x128xbf16>
    %c0_42 = arith.constant 0 : index
    %c0_43 = arith.constant 0 : index
    %98 = vector.load %arg3[%c0_42, %c0_43] : memref<10x128xbf16, #tpu.memory_space<vmem>>, vector<10x128xbf16>
    %cst_44 = arith.constant dense<0.000000e+00> : vector<64x10xf32>
    %99 = tpu.matmul %97, %98, %cst_44 {dimension_numbers = #tpu.dot_dimension_numbers<[1], [1], [0], [0], [0, 0, 1, 0], [], []>} : vector<64x128xbf16>, vector<10x128xbf16>, vector<64x10xf32> -> vector<64x10xf32>
    %c0_45 = arith.constant 0 : index
    %c0_46 = arith.constant 0 : index
    %100 = vector.load %arg4[%c0_45, %c0_46] : memref<1x10xf32, #tpu.memory_space<vmem>>, vector<1x10xf32>
    %101 = vector.broadcast %100 : vector<1x10xf32> to vector<64x10xf32>
    %102 = arith.addf %99, %101 : vector<64x10xf32>
    %cst_47 = arith.constant 0.000000e+00 : f32
    %103 = vector.broadcast %cst_47 : f32 to vector<8x10xf32>
    %cst_48 = arith.constant 0.000000e+00 : f32
    %104 = vector.broadcast %cst_48 : f32 to vector<8x10xf32>
    %105 = vector.extract_strided_slice %102 {offsets = [0, 0], sizes = [8, 10], strides = [1, 1]} : vector<64x10xf32> to vector<8x10xf32>
    %cst_49 = arith.constant 0.899999976 : f32
    %106 = vector.broadcast %cst_49 : f32 to vector<8x10xf32>
    %107 = arith.mulf %106, %103 : vector<8x10xf32>
    %108 = arith.addf %107, %105 : vector<8x10xf32>
    %cst_50 = arith.constant 1.000000e+00 : f32
    %109 = vector.broadcast %cst_50 : f32 to vector<8x10xf32>
    %110 = arith.mulf %104, %109 : vector<8x10xf32>
    %111 = arith.subf %108, %110 : vector<8x10xf32>
    %cst_51 = arith.constant 1.000000e+00 : f32
    %112 = vector.broadcast %cst_51 : f32 to vector<8x10xf32>
    %113 = arith.cmpf ogt, %111, %112 : vector<8x10xf32>
    %114 = arith.extui %113 : vector<8x10xi1> to vector<8x10xi32>
    %115 = arith.sitofp %114 : vector<8x10xi32> to vector<8x10xf32>
    %c0_52 = arith.constant 0 : index
    %c0_53 = arith.constant 0 : index
    %c0_54 = arith.constant 0 : index
    %116 = vector.load %arg5[%c0_52, %c0_53, %c0_54] : memref<8x8x10xf32, #tpu.memory_space<vmem>>, vector<1x8x10xf32>
    %117 = vector.shape_cast %116 : vector<1x8x10xf32> to vector<8x10xf32>
    %118 = vector.shape_cast %115 : vector<8x10xf32> to vector<1x8x10xf32>
    tpu.vector_store %arg5[%c0_52, %c0_53, %c0_54], %118 {strides = array<i32>} : memref<8x8x10xf32, #tpu.memory_space<vmem>>, vector<1x8x10xf32>,
    %119 = vector.extract_strided_slice %102 {offsets = [8, 0], sizes = [8, 10], strides = [1, 1]} : vector<64x10xf32> to vector<8x10xf32>
    %cst_55 = arith.constant 0.899999976 : f32
    %120 = vector.broadcast %cst_55 : f32 to vector<8x10xf32>
    %121 = arith.mulf %120, %111 : vector<8x10xf32>
    %122 = arith.addf %121, %119 : vector<8x10xf32>
    %cst_56 = arith.constant 1.000000e+00 : f32
    %123 = vector.broadcast %cst_56 : f32 to vector<8x10xf32>
    %124 = arith.mulf %115, %123 : vector<8x10xf32>
    %125 = arith.subf %122, %124 : vector<8x10xf32>
    %cst_57 = arith.constant 1.000000e+00 : f32
    %126 = vector.broadcast %cst_57 : f32 to vector<8x10xf32>
    %127 = arith.cmpf ogt, %125, %126 : vector<8x10xf32>
    %128 = arith.extui %127 : vector<8x10xi1> to vector<8x10xi32>
    %129 = arith.sitofp %128 : vector<8x10xi32> to vector<8x10xf32>
    %c1 = arith.constant 1 : index
    %c0_58 = arith.constant 0 : index
    %c0_59 = arith.constant 0 : index
    %130 = vector.load %arg5[%c1, %c0_58, %c0_59] : memref<8x8x10xf32, #tpu.memory_space<vmem>>, vector<1x8x10xf32>
    %131 = vector.shape_cast %130 : vector<1x8x10xf32> to vector<8x10xf32>
    %132 = vector.shape_cast %129 : vector<8x10xf32> to vector<1x8x10xf32>
    tpu.vector_store %arg5[%c1, %c0_58, %c0_59], %132 {strides = array<i32>} : memref<8x8x10xf32, #tpu.memory_space<vmem>>, vector<1x8x10xf32>,
    %133 = vector.extract_strided_slice %102 {offsets = [16, 0], sizes = [8, 10], strides = [1, 1]} : vector<64x10xf32> to vector<8x10xf32>
    %cst_60 = arith.constant 0.899999976 : f32
    %134 = vector.broadcast %cst_60 : f32 to vector<8x10xf32>
    %135 = arith.mulf %134, %125 : vector<8x10xf32>
    %136 = arith.addf %135, %133 : vector<8x10xf32>
    %cst_61 = arith.constant 1.000000e+00 : f32
    %137 = vector.broadcast %cst_61 : f32 to vector<8x10xf32>
    %138 = arith.mulf %129, %137 : vector<8x10xf32>
    %139 = arith.subf %136, %138 : vector<8x10xf32>
    %cst_62 = arith.constant 1.000000e+00 : f32
    %140 = vector.broadcast %cst_62 : f32 to vector<8x10xf32>
    %141 = arith.cmpf ogt, %139, %140 : vector<8x10xf32>
    %142 = arith.extui %141 : vector<8x10xi1> to vector<8x10xi32>
    %143 = arith.sitofp %142 : vector<8x10xi32> to vector<8x10xf32>
    %c2 = arith.constant 2 : index
    %c0_63 = arith.constant 0 : index
    %c0_64 = arith.constant 0 : index
    %144 = vector.load %arg5[%c2, %c0_63, %c0_64] : memref<8x8x10xf32, #tpu.memory_space<vmem>>, vector<1x8x10xf32>
    %145 = vector.shape_cast %144 : vector<1x8x10xf32> to vector<8x10xf32>
    %146 = vector.shape_cast %143 : vector<8x10xf32> to vector<1x8x10xf32>
    tpu.vector_store %arg5[%c2, %c0_63, %c0_64], %146 {strides = array<i32>} : memref<8x8x10xf32, #tpu.memory_space<vmem>>, vector<1x8x10xf32>,
    %147 = vector.extract_strided_slice %102 {offsets = [24, 0], sizes = [8, 10], strides = [1, 1]} : vector<64x10xf32> to vector<8x10xf32>
    %cst_65 = arith.constant 0.899999976 : f32
    %148 = vector.broadcast %cst_65 : f32 to vector<8x10xf32>
    %149 = arith.mulf %148, %139 : vector<8x10xf32>
    %150 = arith.addf %149, %147 : vector<8x10xf32>
    %cst_66 = arith.constant 1.000000e+00 : f32
    %151 = vector.broadcast %cst_66 : f32 to vector<8x10xf32>
    %152 = arith.mulf %143, %151 : vector<8x10xf32>
    %153 = arith.subf %150, %152 : vector<8x10xf32>
    %cst_67 = arith.constant 1.000000e+00 : f32
    %154 = vector.broadcast %cst_67 : f32 to vector<8x10xf32>
    %155 = arith.cmpf ogt, %153, %154 : vector<8x10xf32>
    %156 = arith.extui %155 : vector<8x10xi1> to vector<8x10xi32>
    %157 = arith.sitofp %156 : vector<8x10xi32> to vector<8x10xf32>
    %c3 = arith.constant 3 : index
    %c0_68 = arith.constant 0 : index
    %c0_69 = arith.constant 0 : index
    %158 = vector.load %arg5[%c3, %c0_68, %c0_69] : memref<8x8x10xf32, #tpu.memory_space<vmem>>, vector<1x8x10xf32>
    %159 = vector.shape_cast %158 : vector<1x8x10xf32> to vector<8x10xf32>
    %160 = vector.shape_cast %157 : vector<8x10xf32> to vector<1x8x10xf32>
    tpu.vector_store %arg5[%c3, %c0_68, %c0_69], %160 {strides = array<i32>} : memref<8x8x10xf32, #tpu.memory_space<vmem>>, vector<1x8x10xf32>,
    %161 = vector.extract_strided_slice %102 {offsets = [32, 0], sizes = [8, 10], strides = [1, 1]} : vector<64x10xf32> to vector<8x10xf32>
    %cst_70 = arith.constant 0.899999976 : f32
    %162 = vector.broadcast %cst_70 : f32 to vector<8x10xf32>
    %163 = arith.mulf %162, %153 : vector<8x10xf32>
    %164 = arith.addf %163, %161 : vector<8x10xf32>
    %cst_71 = arith.constant 1.000000e+00 : f32
    %165 = vector.broadcast %cst_71 : f32 to vector<8x10xf32>
    %166 = arith.mulf %157, %165 : vector<8x10xf32>
    %167 = arith.subf %164, %166 : vector<8x10xf32>
    %cst_72 = arith.constant 1.000000e+00 : f32
    %168 = vector.broadcast %cst_72 : f32 to vector<8x10xf32>
    %169 = arith.cmpf ogt, %167, %168 : vector<8x10xf32>
    %170 = arith.extui %169 : vector<8x10xi1> to vector<8x10xi32>
    %171 = arith.sitofp %170 : vector<8x10xi32> to vector<8x10xf32>
    %c4 = arith.constant 4 : index
    %c0_73 = arith.constant 0 : index
    %c0_74 = arith.constant 0 : index
    %172 = vector.load %arg5[%c4, %c0_73, %c0_74] : memref<8x8x10xf32, #tpu.memory_space<vmem>>, vector<1x8x10xf32>
    %173 = vector.shape_cast %172 : vector<1x8x10xf32> to vector<8x10xf32>
    %174 = vector.shape_cast %171 : vector<8x10xf32> to vector<1x8x10xf32>
    tpu.vector_store %arg5[%c4, %c0_73, %c0_74], %174 {strides = array<i32>} : memref<8x8x10xf32, #tpu.memory_space<vmem>>, vector<1x8x10xf32>,
    %175 = vector.extract_strided_slice %102 {offsets = [40, 0], sizes = [8, 10], strides = [1, 1]} : vector<64x10xf32> to vector<8x10xf32>
    %cst_75 = arith.constant 0.899999976 : f32
    %176 = vector.broadcast %cst_75 : f32 to vector<8x10xf32>
    %177 = arith.mulf %176, %167 : vector<8x10xf32>
    %178 = arith.addf %177, %175 : vector<8x10xf32>
    %cst_76 = arith.constant 1.000000e+00 : f32
    %179 = vector.broadcast %cst_76 : f32 to vector<8x10xf32>
    %180 = arith.mulf %171, %179 : vector<8x10xf32>
    %181 = arith.subf %178, %180 : vector<8x10xf32>
    %cst_77 = arith.constant 1.000000e+00 : f32
    %182 = vector.broadcast %cst_77 : f32 to vector<8x10xf32>
    %183 = arith.cmpf ogt, %181, %182 : vector<8x10xf32>
    %184 = arith.extui %183 : vector<8x10xi1> to vector<8x10xi32>
    %185 = arith.sitofp %184 : vector<8x10xi32> to vector<8x10xf32>
    %c5 = arith.constant 5 : index
    %c0_78 = arith.constant 0 : index
    %c0_79 = arith.constant 0 : index
    %186 = vector.load %arg5[%c5, %c0_78, %c0_79] : memref<8x8x10xf32, #tpu.memory_space<vmem>>, vector<1x8x10xf32>
    %187 = vector.shape_cast %186 : vector<1x8x10xf32> to vector<8x10xf32>
    %188 = vector.shape_cast %185 : vector<8x10xf32> to vector<1x8x10xf32>
    tpu.vector_store %arg5[%c5, %c0_78, %c0_79], %188 {strides = array<i32>} : memref<8x8x10xf32, #tpu.memory_space<vmem>>, vector<1x8x10xf32>,
    %189 = vector.extract_strided_slice %102 {offsets = [48, 0], sizes = [8, 10], strides = [1, 1]} : vector<64x10xf32> to vector<8x10xf32>
    %cst_80 = arith.constant 0.899999976 : f32
    %190 = vector.broadcast %cst_80 : f32 to vector<8x10xf32>
    %191 = arith.mulf %190, %181 : vector<8x10xf32>
    %192 = arith.addf %191, %189 : vector<8x10xf32>
    %cst_81 = arith.constant 1.000000e+00 : f32
    %193 = vector.broadcast %cst_81 : f32 to vector<8x10xf32>
    %194 = arith.mulf %185, %193 : vector<8x10xf32>
    %195 = arith.subf %192, %194 : vector<8x10xf32>
    %cst_82 = arith.constant 1.000000e+00 : f32
    %196 = vector.broadcast %cst_82 : f32 to vector<8x10xf32>
    %197 = arith.cmpf ogt, %195, %196 : vector<8x10xf32>
    %198 = arith.extui %197 : vector<8x10xi1> to vector<8x10xi32>
    %199 = arith.sitofp %198 : vector<8x10xi32> to vector<8x10xf32>
    %c6 = arith.constant 6 : index
    %c0_83 = arith.constant 0 : index
    %c0_84 = arith.constant 0 : index
    %200 = vector.load %arg5[%c6, %c0_83, %c0_84] : memref<8x8x10xf32, #tpu.memory_space<vmem>>, vector<1x8x10xf32>
    %201 = vector.shape_cast %200 : vector<1x8x10xf32> to vector<8x10xf32>
    %202 = vector.shape_cast %199 : vector<8x10xf32> to vector<1x8x10xf32>
    tpu.vector_store %arg5[%c6, %c0_83, %c0_84], %202 {strides = array<i32>} : memref<8x8x10xf32, #tpu.memory_space<vmem>>, vector<1x8x10xf32>,
    %203 = vector.extract_strided_slice %102 {offsets = [56, 0], sizes = [8, 10], strides = [1, 1]} : vector<64x10xf32> to vector<8x10xf32>
    %cst_85 = arith.constant 0.899999976 : f32
    %204 = vector.broadcast %cst_85 : f32 to vector<8x10xf32>
    %205 = arith.mulf %204, %195 : vector<8x10xf32>
    %206 = arith.addf %205, %203 : vector<8x10xf32>
    %cst_86 = arith.constant 1.000000e+00 : f32
    %207 = vector.broadcast %cst_86 : f32 to vector<8x10xf32>
    %208 = arith.mulf %199, %207 : vector<8x10xf32>
    %209 = arith.subf %206, %208 : vector<8x10xf32>
    %cst_87 = arith.constant 1.000000e+00 : f32
    %210 = vector.broadcast %cst_87 : f32 to vector<8x10xf32>
    %211 = arith.cmpf ogt, %209, %210 : vector<8x10xf32>
    %212 = arith.extui %211 : vector<8x10xi1> to vector<8x10xi32>
    %213 = arith.sitofp %212 : vector<8x10xi32> to vector<8x10xf32>
    %c7 = arith.constant 7 : index
    %c0_88 = arith.constant 0 : index
    %c0_89 = arith.constant 0 : index
    %214 = vector.load %arg5[%c7, %c0_88, %c0_89] : memref<8x8x10xf32, #tpu.memory_space<vmem>>, vector<1x8x10xf32>
    %215 = vector.shape_cast %214 : vector<1x8x10xf32> to vector<8x10xf32>
    %216 = vector.shape_cast %213 : vector<8x10xf32> to vector<1x8x10xf32>
    tpu.vector_store %arg5[%c7, %c0_88, %c0_89], %216 {strides = array<i32>} : memref<8x8x10xf32, #tpu.memory_space<vmem>>, vector<1x8x10xf32>,
    return
  }
}

</mosaic_0001>

<llo_original>
// kernel: snn_forward.1
$region0: #{snn_forward.1}
  #allocation0 [shape = 'u32[]', space=smem, size = 0x4, offset = 0x4, fixed_abs, tag = 'smem constant byte address 0x4 - core index']
  #allocation1 [shape = 'u32[144,128]{1,0:T(1,128)}', space=vmem, size = 0x12000, scoped, tag = 'internal scratch']
  #allocation2 [shape = 'f32[64,128]{1,0:T(8,128)}', space=vmem, size = 0x8000, scoped, tag = 'scratch operand']
  %s0 = inlined_call_operand.vmem [shape: f32[8,32], index: 0, kind: input, shape index: {}]
  %s1 = inlined_call_operand.vmem [shape: f32[128,32], index: 1, kind: input, shape index: {}]
  %s2 = inlined_call_operand.vmem [shape: f32[1,128], index: 2, kind: input, shape index: {}]
  %s3 = inlined_call_operand.vmem [shape: bf16[10,128], index: 3, kind: input, shape index: {}]
  %s4 = inlined_call_operand.vmem [shape: f32[1,10], index: 4, kind: input, shape index: {}]
  %s5 = inlined_call_operand.hbm [shape: f32[8,8,10], index: 5, kind: output, shape index: {}]
  %s6 = sld [smem:[#allocation0]]
  $region30: #{snn_forward.1} parent=0
    _
  %s8 = ssub.s32 1, %s6
  %s9 = scalar_select 0, %s8, %s6
  $region1: #{snn_forward.1} parent=0
    #allocation3 [shape = 'u8[32768]{0}', space=vmem, size = 0x8000, scoped, tag = 'output window, operand 0, single buffered']
    #allocation4 [shape = 's32[1]{0}', space=sflag, size = 0x4, scoped, tag = 'scoped memory for snn_forward.1']
    %10 = vsyncpa [#allocation4], 0
    // Predicated region
    $region2: #{snn_forward.1} parent=1 // pred_check
      _
    $region3: #{snn_forward.1} parent=1 // pred_check_branch
      %12 = sbr.rel (0) target = $region5
    $region4: #{snn_forward.1} parent=1 // pred_region
      _
    $region5: #{snn_forward.1} parent=1 // pred_fallthru
      _
    // Predicated region
    $region6: #{snn_forward.1} parent=1 // pred_check
      _
    $region7: #{snn_forward.1} parent=1 // pred_check_branch
      %14 = sbr.rel (0) target = $region9
    $region8: #{snn_forward.1} parent=1 // pred_region
      _
    $region9: #{snn_forward.1} parent=1 // pred_fallthru
      _
    // Predicated region
    $region10: #{snn_forward.1} parent=1 // pred_check
      _
    $region11: #{snn_forward.1} parent=1 // pred_check_branch
      %16 = sbr.rel (0) target = $region13
    $region12: #{snn_forward.1} parent=1 // pred_region
      _
    $region13: #{snn_forward.1} parent=1 // pred_fallthru
      _
    // Predicated region
    $region14: #{snn_forward.1} parent=1 // pred_check
      _
    $region15: #{snn_forward.1} parent=1 // pred_check_branch
      %18 = sbr.rel (0) target = $region17
    $region16: #{snn_forward.1} parent=1 // pred_region
      _
    $region17: #{snn_forward.1} parent=1 // pred_fallthru
      _
    // Predicated region
    $region18: #{snn_forward.1} parent=1 // pred_check
      _
    $region19: #{snn_forward.1} parent=1 // pred_check_branch
      %20 = sbr.rel (0) target = $region21
    $region20: #{snn_forward.1} parent=1 // pred_region
      _
    $region21: #{snn_forward.1} parent=1 // pred_fallthru
      _
    %v22 = vld [vmem:[%s0] sm:$0xff]
    %v23 = vld [vmem:[%s1] sm:$0xff]
    %v24 = vld [vmem:[%s1 + $0x8] sm:$0xff]
    %v25 = vld [vmem:[%s1 + $0x10] sm:$0xff]
    %v26 = vld [vmem:[%s1 + $0x18] sm:$0xff]
    %v27 = vld [vmem:[%s1 + $0x20] sm:$0xff]
    %v28 = vld [vmem:[%s1 + $0x28] sm:$0xff]
    %v29 = vld [vmem:[%s1 + $0x30] sm:$0xff]
    %v30 = vld [vmem:[%s1 + $0x38] sm:$0xff]
    %v31 = vld [vmem:[%s1 + $0x40] sm:$0xff]
    %v32 = vld [vmem:[%s1 + $0x48] sm:$0xff]
    %v33 = vld [vmem:[%s1 + $0x50] sm:$0xff]
    %v34 = vld [vmem:[%s1 + $0x58] sm:$0xff]
    %v35 = vld [vmem:[%s1 + $0x60] sm:$0xff]
    %v36 = vld [vmem:[%s1 + $0x68] sm:$0xff]
    %v37 = vld [vmem:[%s1 + $0x70] sm:$0xff]
    %v38 = vld [vmem:[%s1 + $0x78] sm:$0xff]
    %v39 = vld [vmem:[%s2] sm:$0x1]
    %v41 = vlaneseq
    %v42 = vshrl.u32 %v41, 7
    %v43 = vsub.s32 0, %v42
    %v44 = vrot.slane %v39, %v43
    %vm46 = vcmask 261120
    %v48 = vsel %vm46, %v22, 0
    %v51 = vsel %vm46, %v23, 0
    %v54 = vsel %vm46, %v24, 0
    %v57 = vsel %vm46, %v25, 0
    %v60 = vsel %vm46, %v26, 0
    %v63 = vsel %vm46, %v27, 0
    %v66 = vsel %vm46, %v28, 0
    %v69 = vsel %vm46, %v29, 0
    %v72 = vsel %vm46, %v30, 0
    %v75 = vsel %vm46, %v31, 0
    %v78 = vsel %vm46, %v32, 0
    %v81 = vsel %vm46, %v33, 0
    %v84 = vsel %vm46, %v34, 0
    %v87 = vsel %vm46, %v35, 0
    %v90 = vsel %vm46, %v36, 0
    %v93 = vsel %vm46, %v37, 0
    %v96 = vsel %vm46, %v38, 0
    %98 = vmatprep.subr.mxu0 0.0
    %99 = vmatpush1.xpose.msra.mxu0 %v51
    %100 = vmatprep.subr.mxu0 0.0
    %101 = vmatpush1.xpose.msra.mxu0 %v54
    %102 = vmatprep.subr.mxu0 0.0
    %103 = vmatpush1.xpose.msra.mxu0 %v57
    %104 = vmatprep.subr.mxu0 0.0
    %105 = vmatpush1.xpose.msra.mxu0 %v60
    %106 = vmatprep.subr.mxu0 0.0
    %107 = vmatpush1.xpose.msra.mxu0 %v63
    %108 = vmatprep.subr.mxu0 0.0
    %109 = vmatpush1.xpose.msra.mxu0 %v66
    %110 = vmatprep.subr.mxu0 0.0
    %111 = vmatpush1.xpose.msra.mxu0 %v69
    %112 = vmatprep.subr.mxu0 0.0
    %113 = vmatpush1.xpose.msra.mxu0 %v72
    %114 = vmatprep.subr.mxu0 0.0
    %115 = vmatpush1.xpose.msra.mxu0 %v75
    %116 = vmatprep.subr.mxu0 0.0
    %117 = vmatpush1.xpose.msra.mxu0 %v78
    %118 = vmatprep.subr.mxu0 0.0
    %119 = vmatpush1.xpose.msra.mxu0 %v81
    %120 = vmatprep.subr.mxu0 0.0
    %121 = vmatpush1.xpose.msra.mxu0 %v84
    %122 = vmatprep.subr.mxu0 0.0
    %123 = vmatpush1.xpose.msra.mxu0 %v87
    %124 = vmatprep.subr.mxu0 0.0
    %125 = vmatpush1.xpose.msra.mxu0 %v90
    %126 = vmatprep.subr.mxu0 0.0
    %127 = vmatpush1.xpose.msra.mxu0 %v93
    %128 = vmatprep.subr.mxu0 0.0
    %129 = vmatpush1.xpose.msra.mxu0 %v96
    %130 = vmatprep.subr.mxu0 0.0
    %131 = vmatpush1.xpose.msra.mxu0 0.0
    %132 = vmatprep.subr.mxu0 0.0
    %133 = vmatpush1.xpose.msra.mxu0 0.0
    %134 = vmatprep.subr.mxu0 0.0
    %135 = vmatpush1.xpose.msra.mxu0 0.0
    %136 = vmatprep.subr.mxu0 0.0
    %137 = vmatpush1.xpose.msra.mxu0 0.0
    %138 = vmatprep.subr.mxu0 0.0
    %139 = vmatpush1.xpose.msra.mxu0 0.0
    %140 = vmatprep.subr.mxu0 0.0
    %141 = vmatpush1.xpose.msra.mxu0 0.0
    %142 = vmatprep.subr.mxu0 0.0
    %143 = vmatpush1.xpose.msra.mxu0 0.0
    %144 = vmatprep.subr.mxu0 0.0
    %145 = vmatpush1.xpose.msra.mxu0 0.0
    %146 = vmatprep.subr.mxu0 0.0
    %147 = vmatpush1.xpose.msra.mxu0 0.0
    %148 = vmatprep.subr.mxu0 0.0
    %149 = vmatpush1.xpose.msra.mxu0 0.0
    %150 = vmatprep.subr.mxu0 0.0
    %151 = vmatpush1.xpose.msra.mxu0 0.0
    %152 = vmatprep.subr.mxu0 0.0
    %153 = vmatpush1.xpose.msra.mxu0 0.0
    %154 = vmatprep.subr.mxu0 0.0
    %155 = vmatpush1.xpose.msra.mxu0 0.0
    %156 = vmatprep.subr.mxu0 0.0
    %157 = vmatpush1.xpose.msra.mxu0 0.0
    %158 = vmatprep.subr.mxu0 0.0
    %159 = vmatpush1.xpose.msra.mxu0 0.0
    %160 = vmatprep.subr.mxu0 0.0
    %161 = vmatpush1.xpose.msra.mxu0 0.0
    %162 = vmatprep.mubr.f32.mxu0 0.0
    %163 = vmatmul.mubr.f32.gmra.mrb[0].mxu0 %v48
    %v164 = vpop.f32.mrb[0].mxu0
    %v165 = vadd.f32 %v44, %v164
    %v166 = vpop.f32.mrb[0].mxu0
    %167 = vdwg.mxu0
    %v168 = vadd.f32 %v165, 0.0
    %vm169 = vcmp.gt.f32.partialorder %v168, 1.0
    %v170 = vsel %vm169, 1, 0
    %v171 = vcvt.s32.f32 %v170
    %172 = vst [vmem:[#allocation2] sm:$0xff] %v171
    %v173 = vmul.f32 %v168, 0.9
    %v174 = vadd.f32 %v173, %v165
    %v175 = vsub.f32 %v174, %v171
    %vm176 = vcmp.gt.f32.partialorder %v175, 1.0
    %v177 = vsel %vm176, 1, 0
    %v178 = vcvt.s32.f32 %v177
    %179 = vst [vmem:[#allocation2 + $0x8] sm:$0xff] %v178
    %v180 = vmul.f32 %v175, 0.9
    %v181 = vadd.f32 %v180, %v165
    %v182 = vsub.f32 %v181, %v178
    %vm183 = vcmp.gt.f32.partialorder %v182, 1.0
    %v184 = vsel %vm183, 1, 0
    %v185 = vcvt.s32.f32 %v184
    %186 = vst [vmem:[#allocation2 + $0x10] sm:$0xff] %v185
    %v187 = vmul.f32 %v182, 0.9
    %v188 = vadd.f32 %v187, %v165
    %v189 = vsub.f32 %v188, %v185
    %vm190 = vcmp.gt.f32.partialorder %v189, 1.0
    %v191 = vsel %vm190, 1, 0
    %v192 = vcvt.s32.f32 %v191
    %193 = vst [vmem:[#allocation2 + $0x18] sm:$0xff] %v192
    %v194 = vmul.f32 %v189, 0.9
    %v195 = vadd.f32 %v194, %v165
    %v196 = vsub.f32 %v195, %v192
    %vm197 = vcmp.gt.f32.partialorder %v196, 1.0
    %v198 = vsel %vm197, 1, 0
    %v199 = vcvt.s32.f32 %v198
    %200 = vst [vmem:[#allocation2 + $0x20] sm:$0xff] %v199
    %v201 = vmul.f32 %v196, 0.9
    %v202 = vadd.f32 %v201, %v165
    %v203 = vsub.f32 %v202, %v199
    %vm204 = vcmp.gt.f32.partialorder %v203, 1.0
    %v205 = vsel %vm204, 1, 0
    %v206 = vcvt.s32.f32 %v205
    %207 = vst [vmem:[#allocation2 + $0x28] sm:$0xff] %v206
    %v208 = vmul.f32 %v203, 0.9
    %v209 = vadd.f32 %v208, %v165
    %v210 = vsub.f32 %v209, %v206
    %vm211 = vcmp.gt.f32.partialorder %v210, 1.0
    %v212 = vsel %vm211, 1, 0
    %v213 = vcvt.s32.f32 %v212
    %214 = vst [vmem:[#allocation2 + $0x30] sm:$0xff] %v213
    %v215 = vmul.f32 %v210, 0.9
    %v216 = vadd.f32 %v215, %v165
    %v217 = vsub.f32 %v216, %v213
    %vm218 = vcmp.gt.f32.partialorder %v217, 1.0
    %v219 = vsel %vm218, 1, 0
    %v220 = vcvt.s32.f32 %v219
    %221 = vst [vmem:[#allocation2 + $0x38] sm:$0xff] %v220
    %v222 = vld [vmem:[#allocation2] sm:$0xff]
    %v223 = vld [vmem:[#allocation2 + $0x8] sm:$0xff]
    %v224 = vld [vmem:[#allocation2 + $0x10] sm:$0xff]
    %v225 = vld [vmem:[#allocation2 + $0x18] sm:$0xff]
    %v226 = vld [vmem:[#allocation2 + $0x20] sm:$0xff]
    %v227 = vld [vmem:[#allocation2 + $0x28] sm:$0xff]
    %v228 = vld [vmem:[#allocation2 + $0x30] sm:$0xff]
    %v229 = vld [vmem:[#allocation2 + $0x38] sm:$0xff]
    %v230 = vpack.c.bf16 %v223, %v222
    %v231 = vpack.c.bf16 %v225, %v224
    %v232 = vpack.c.bf16 %v227, %v226
    %v233 = vpack.c.bf16 %v229, %v228
    %v234 = vld [vmem:[%s3] sm:$0xf]
    %v235 = vld [vmem:[%s3 + $0x4] sm:$0x1]
    %v236 = vld [vmem:[%s4] sm:$0x1]
    %v238 = vlaneseq
    %v239 = vshrl.u32 %v238, 7
    %v240 = vsub.s32 0, %v239
    %v241 = vrot.slane %v236, %v240
    %v245 = vunpack.c.l.b16 %v234
    %v246 = vunpack.c.l.b16 %v235
    %v247 = vpack.c.b16 %v246, %v245
    %249 = vmatprep.subr.bf16.mxu0 0
    %250 = vmatpush1.bf16.xpose.msra.mxu0 %v247
    %251 = vmatprep.subr.bf16.mxu0 0
    %252 = vmatpush1.bf16.xpose.msra.mxu0 0
    %253 = vmatprep.subr.bf16.mxu0 0
    %254 = vmatpush1.bf16.xpose.msra.mxu0 0
    %255 = vmatprep.subr.bf16.mxu0 0
    %256 = vmatpush1.bf16.xpose.msra.mxu0 0
    %257 = vmatprep.subr.bf16.mxu0 0
    %258 = vmatpush1.bf16.xpose.msra.mxu0 0
    %259 = vmatprep.subr.bf16.mxu0 0
    %260 = vmatpush1.bf16.xpose.msra.mxu0 0
    %261 = vmatprep.subr.bf16.mxu0 0
    %262 = vmatpush1.bf16.xpose.msra.mxu0 0
    %263 = vmatprep.subr.bf16.mxu0 0
    %264 = vmatpush1.bf16.xpose.msra.mxu0 0
    %265 = vmatprep.subr.bf16.mxu0 0
    %266 = vmatpush1.bf16.xpose.msra.mxu0 0
    %267 = vmatprep.subr.bf16.mxu0 0
    %268 = vmatpush1.bf16.xpose.msra.mxu0 0
    %269 = vmatprep.subr.bf16.mxu0 0
    %270 = vmatpush1.bf16.xpose.msra.mxu0 0
    %271 = vmatprep.subr.bf16.mxu0 0
    %272 = vmatpush1.bf16.xpose.msra.mxu0 0
    %273 = vmatprep.subr.bf16.mxu0 0
    %274 = vmatpush1.bf16.xpose.msra.mxu0 0
    %275 = vmatprep.subr.bf16.mxu0 0
    %276 = vmatpush1.bf16.xpose.msra.mxu0 0
    %277 = vmatprep.subr.bf16.mxu0 0
    %278 = vmatpush1.bf16.xpose.msra.mxu0 0
    %279 = vmatprep.subr.bf16.mxu0 0
    %280 = vmatpush1.bf16.xpose.msra.mxu0 0
    %281 = vmatprep.mubr.bf16.mxu0 0
    %282 = vmatmul.mubr.bf16.gmra.mrb[0].mxu0 %v230
    %v283 = vpop.f32.mrb[0].mxu0
    %v284 = vadd.f32 %v241, %v283
    %v285 = vpop.f32.mrb[0].mxu0
    %v286 = vpop.f32.mrb[0].mxu0
    %v287 = vadd.f32 %v241, %v286
    %v288 = vpop.f32.mrb[0].mxu0
    %289 = vmatprep.mubr.bf16.mxu0 0
    %290 = vmatmul.mubr.bf16.gmra.mrb[0].mxu0 %v231
    %v291 = vpop.f32.mrb[0].mxu0
    %v292 = vadd.f32 %v241, %v291
    %v293 = vpop.f32.mrb[0].mxu0
    %v294 = vpop.f32.mrb[0].mxu0
    %v295 = vadd.f32 %v241, %v294
    %v296 = vpop.f32.mrb[0].mxu0
    %297 = vmatprep.mubr.bf16.mxu0 0
    %298 = vmatmul.mubr.bf16.gmra.mrb[0].mxu0 %v232
    %v299 = vpop.f32.mrb[0].mxu0
    %v300 = vadd.f32 %v241, %v299
    %v301 = vpop.f32.mrb[0].mxu0
    %v302 = vpop.f32.mrb[0].mxu0
    %v303 = vadd.f32 %v241, %v302
    %v304 = vpop.f32.mrb[0].mxu0
    %305 = vmatprep.mubr.bf16.mxu0 0
    %306 = vmatmul.mubr.bf16.gmra.mrb[0].mxu0 %v233
    %v307 = vpop.f32.mrb[0].mxu0
    %v308 = vadd.f32 %v241, %v307
    %v309 = vpop.f32.mrb[0].mxu0
    %v310 = vpop.f32.mrb[0].mxu0
    %v311 = vadd.f32 %v241, %v310
    %v312 = vpop.f32.mrb[0].mxu0
    %313 = vdwg.mxu0
    %v314 = vadd.f32 %v284, 0.0
    %vm315 = vcmp.gt.f32.partialorder %v314, 1.0
    %v316 = vsel %vm315, 1, 0
    %v317 = vcvt.s32.f32 %v316
    %vm318 = vcmask 80896
    %319 = vst.msk [vmem:[#allocation3] sm:$0xff] %vm318, %v317
    %v320 = vmul.f32 %v314, 0.9
    %v321 = vadd.f32 %v320, %v287
    %v322 = vsub.f32 %v321, %v317
    %vm323 = vcmp.gt.f32.partialorder %v322, 1.0
    %v324 = vsel %vm323, 1, 0
    %v325 = vcvt.s32.f32 %v324
    %s326 = scalar_lea.vmem [#allocation3], 8
    %327 = vst.msk [vmem:[%s326] sm:$0xff] %vm318, %v325
    %v328 = vmul.f32 %v322, 0.9
    %v329 = vadd.f32 %v328, %v292
    %v330 = vsub.f32 %v329, %v325
    %vm331 = vcmp.gt.f32.partialorder %v330, 1.0
    %v332 = vsel %vm331, 1, 0
    %v333 = vcvt.s32.f32 %v332
    %s334 = scalar_lea.vmem [#allocation3], 16
    %335 = vst.msk [vmem:[%s334] sm:$0xff] %vm318, %v333
    %v336 = vmul.f32 %v330, 0.9
    %v337 = vadd.f32 %v336, %v295
    %v338 = vsub.f32 %v337, %v333
    %vm339 = vcmp.gt.f32.partialorder %v338, 1.0
    %v340 = vsel %vm339, 1, 0
    %v341 = vcvt.s32.f32 %v340
    %s342 = scalar_lea.vmem [#allocation3], 24
    %343 = vst.msk [vmem:[%s342] sm:$0xff] %vm318, %v341
    %v344 = vmul.f32 %v338, 0.9
    %v345 = vadd.f32 %v344, %v300
    %v346 = vsub.f32 %v345, %v341
    %vm347 = vcmp.gt.f32.partialorder %v346, 1.0
    %v348 = vsel %vm347, 1, 0
    %v349 = vcvt.s32.f32 %v348
    %s350 = scalar_lea.vmem [#allocation3], 32
    %351 = vst.msk [vmem:[%s350] sm:$0xff] %vm318, %v349
    %v352 = vmul.f32 %v346, 0.9
    %v353 = vadd.f32 %v352, %v303
    %v354 = vsub.f32 %v353, %v349
    %vm355 = vcmp.gt.f32.partialorder %v354, 1.0
    %v356 = vsel %vm355, 1, 0
    %v357 = vcvt.s32.f32 %v356
    %s358 = scalar_lea.vmem [#allocation3], 40
    %359 = vst.msk [vmem:[%s358] sm:$0xff] %vm318, %v357
    %v360 = vmul.f32 %v354, 0.9
    %v361 = vadd.f32 %v360, %v308
    %v362 = vsub.f32 %v361, %v357
    %vm363 = vcmp.gt.f32.partialorder %v362, 1.0
    %v364 = vsel %vm363, 1, 0
    %v365 = vcvt.s32.f32 %v364
    %s366 = scalar_lea.vmem [#allocation3], 48
    %367 = vst.msk [vmem:[%s366] sm:$0xff] %vm318, %v365
    %v368 = vmul.f32 %v362, 0.9
    %v369 = vadd.f32 %v368, %v311
    %v370 = vsub.f32 %v369, %v365
    %vm371 = vcmp.gt.f32.partialorder %v370, 1.0
    %v372 = vsel %vm371, 1, 0
    %v373 = vcvt.s32.f32 %v372
    %s374 = scalar_lea.vmem [#allocation3], 56
    %375 = vst.msk [vmem:[%s374] sm:$0xff] %vm318, %v373
    // Predicated region
    $region22: #{snn_forward.1} parent=1 // pred_check
      _
    $region23: #{snn_forward.1} parent=1 // pred_check_branch
      %377 = sbr.rel (0) target = $region25
    $region24: #{snn_forward.1} parent=1 // pred_region
      %s379 = ssub.s32 1024, 1024
      %380 = vsyncadd [#allocation4], %s379
      %s381 = sshll.u32 [#allocation3], 4
      %s382 = int_to_ptr.vmem [resolvable:$true] %s381
      %387 = dma.vmem_to_hbm [thread:$0]  %s382, 1024, %s5, [#allocation4], 128, 128, 8
    $region25: #{snn_forward.1} parent=1 // pred_fallthru
      _
    // Predicated region
    $region26: #{snn_forward.1} parent=1 // pred_check
      _
    $region27: #{snn_forward.1} parent=1 // pred_check_branch
      %389 = sbr.rel (0) target = $region29
    $region28: #{snn_forward.1} parent=1 // pred_region
      %390 = dma.done [#allocation4], 1024
    $region29: #{snn_forward.1} parent=1 // pred_fallthru
      _
    %391 = vsyncpa [#allocation4], 1

</llo_original>
